<compile_context>
chip_gen: v7x
topology: tpu7x:2x2x1
jax: 0.10.0
libtpu: 0.0.40
codegen_flags: <defaults>
</compile_context>

<pallas_src>
import functools

import jax
import jax.numpy as jnp
from jax.experimental import pallas as pl
from jax.experimental.pallas import tpu as pltpu

NEG_SLOPE = 0.2  # GATConv default negative_slope


def _gat_kernel(xT_ref, adjT_ref, wT_ref, att_ref, sel_ref, selT_ref, blk_ref, bias_ref,
                o_ref, *, num_heads, head_dim):
    # xT_ref:   (F, M)        node features, transposed slab; M = bt_tile * num_nodes
    # adjT_ref: (N, M) int8   adjT[j, s*N+i] != 0 <=> edge (source j) -> (target i) in
    #                         slice s; self-loops already OR-ed in.  Lane-dense.
    # wT_ref:   (H*C, F)      GATConv linear weight, transposed
    # att_ref:  (2H, H*C)     rows 0..H-1: block-diag att_src; rows H..2H-1: att_dst
    # sel_ref:  (M, N)  f32   tiled identity: sel[r, j] = [r mod N == j]
    # selT_ref: (N, M)  f32   its transpose
    # blk_ref:  (M, M)  f32   block-diagonal mask: blk[r, c] = [r//N == c//N]
    # bias_ref: (H*C, 1)
    # o_ref:    (H*C, M)      transposed output slab (lane-dense stores)

    # ---- fused linear transform, already in transposed layout: one MXU matmul ---------
    hT = jnp.dot(wT_ref[...], xT_ref[...], preferred_element_type=jnp.float32)  # (H*C, M)

    # ---- per-head source/target logits for the whole slab in one matmul ---------------
    logits = jnp.dot(att_ref[...], hT, preferred_element_type=jnp.float32)      # (2H, M)

    mask = adjT_ref[...] != 0                     # (N, M) bool: edge j -> target column
    blk = blk_ref[...]
    sel = sel_ref[...]
    selT = selT_ref[...]

    outs = []
    for h in range(num_heads):                    # static; num_heads == 1 here
        ls_row = logits[h:h + 1, :]               # (1, M): a_src of slab row r
        ld_row = logits[num_heads + h:num_heads + h + 1, :]   # (1, M): a_dst of target col
        # Spread a_src to source-major (N, M): asrc[j, s*N+i] = a_src[s*N+j].
        k_mat = selT * ls_row                                               # (N, M)
        asrc = jnp.dot(k_mat, blk, preferred_element_type=jnp.float32)      # (N, M)

        e = asrc + ld_row                         # (N, M): e[j, col] = a_src + a_dst
        e = jnp.maximum(e, NEG_SLOPE * e)         # LeakyReLU(0.2)
        e = jnp.where(mask, e, -1e30)
        e = e - jnp.max(e, axis=0, keepdims=True)     # softmax over the 16 source sublanes
        p = jnp.exp(e)                            # masked entries underflow to exactly 0
        denom = jnp.sum(p, axis=0, keepdims=True)     # (1, M); >= 1 thanks to self-loops
        q = p * pl.reciprocal(denom)              # (N, M) attention weights

        # Expand q back to block-diagonal (M, M) and do one lane-dense output matmul.
        qbig = jnp.dot(sel, q, preferred_element_type=jnp.float32) * blk    # (M, M)
        hT_h = hT[h * head_dim:(h + 1) * head_dim, :]                       # (C, M)
        outs.append(jnp.dot(hT_h, qbig, preferred_element_type=jnp.float32))  # (C, M)

    out = outs[0] if num_heads == 1 else jnp.concatenate(outs, axis=0)      # (H*C, M)
    o_ref[...] = (out + bias_ref[...]).astype(o_ref.dtype)


def _att_block(att_src, att_dst):
    """(H, C) att vectors -> (2H, H*C): block-diag att_src rows, then att_dst rows."""
    num_h, c = att_src.shape
    mat = jnp.zeros((2 * num_h, num_h * c), dtype=jnp.float32)
    for h in range(num_h):
        mat = mat.at[h, h * c:(h + 1) * c].set(att_src[h])
        mat = mat.at[num_h + h, h * c:(h + 1) * c].set(att_dst[h])
    return mat


@functools.partial(jax.jit, static_argnames=("num_heads", "head_dim", "bt_tile"))
def gat_layer_forward(x, adj, w, att_src, att_dst, bias, *, num_heads, head_dim,
                      bt_tile=8):
    """x: (B,T,N,F) f32; adj: (B,T,N,N) with adj[b,t,j,i] != 0 <=> edge j -> i.

    Returns (B, T, N, num_heads*head_dim) f32.
    bt_tile=8 with N=16 gives M=128 fused rows per grid step and grid=(4,): lane-dense
    DMAs/stores, >=2 pipelined steps per TensorCore on v7x, and 64 KB (M,M) intermediates.
    """
    B, T, N, F = x.shape
    HC = num_heads * head_dim
    BT = B * T
    bt_tile = max(1, min(bt_tile, BT))
    while BT % bt_tile:
        bt_tile -= 1
    if (bt_tile * N) % 128 != 0 and bt_tile != BT:
        bt_tile = BT                      # fall back to a single full block (always legal)
    M = bt_tile * N
    grid = (BT // bt_tile,)

    # ---- wrapper-side layout plumbing (XLA, outside the kernel) -----------------------
    xT = x.reshape(BT * N, F).T                                        # (F, BT*N) lane-dense
    eye = jnp.eye(N, dtype=bool)
    adj_m = jnp.logical_or(adj != 0, eye)                              # (B,T,N,N) [.., j, i]
    adjT = jnp.transpose(adj_m, (2, 0, 1, 3)).reshape(N, BT * N).astype(jnp.int8)
    wT = w.T                                                           # (H*C, F)
    att2 = _att_block(att_src, att_dst)                                # (2H, H*C)
    bias_col = bias.reshape(HC, 1)

    # Constant structure matrices (one block's worth; same for every grid step).
    r = jnp.arange(M)
    sel = (r[:, None] % N == jnp.arange(N)[None, :]).astype(jnp.float32)   # (M, N)
    selT = sel.T                                                           # (N, M)
    blk = (r[:, None] // N == r[None, :] // N).astype(jnp.float32)         # (M, M)

    kernel = functools.partial(_gat_kernel, num_heads=num_heads, head_dim=head_dim)
    outT = pl.pallas_call(
        kernel,
        out_shape=jax.ShapeDtypeStruct((HC, BT * N), jnp.float32),
        grid=grid,
        in_specs=[
            pl.BlockSpec((F, M), lambda g: (0, g)),             # xT slab (lane-dense)
            pl.BlockSpec((N, M), lambda g: (0, g)),             # adjacency slab (int8)
            pl.BlockSpec((HC, F), lambda g: (0, 0)),            # weight^T (broadcast)
            pl.BlockSpec((2 * num_heads, HC), lambda g: (0, 0)),  # att_src/att_dst blocks
            pl.BlockSpec((M, N), lambda g: (0, 0)),             # tiled identity
            pl.BlockSpec((N, M), lambda g: (0, 0)),             # tiled identity^T
            pl.BlockSpec((M, M), lambda g: (0, 0)),             # block-diagonal mask
            pl.BlockSpec((HC, 1), lambda g: (0, 0)),            # bias column
        ],
        out_specs=pl.BlockSpec((HC, M), lambda g: (0, g)),      # lane-dense output slab
        compiler_params=pltpu.CompilerParams(
            dimension_semantics=("parallel",)),
    )(xT, adjT, wT, att2, sel, selT, blk, bias_col)

    # (H*C, BT*N) -> (B, T, N, H*C): cheap XLA layout plumbing outside the kernel.
    return outT.T.reshape(B, T, N, HC)


def gat_reference(x, adj, w, att_src, att_dst, bias, num_heads, head_dim):
    """Pure-JAX reference mirroring GATConv + the per-time-step loop (vectorized)."""
    B, T, N, F = x.shape
    h = jnp.einsum('btnf,fk->btnk', x, w).reshape(B, T, N, num_heads, head_dim)
    a_s = jnp.einsum('btnhc,hc->btnh', h, att_src)
    a_d = jnp.einsum('btnhc,hc->btnh', h, att_dst)
    e = a_d[:, :, :, None, :] + a_s[:, :, None, :, :]        # (B,T,i,j,H)
    e = jnp.where(e > 0, e, NEG_SLOPE * e)
    eye = jnp.eye(N, dtype=bool)
    mask = (jnp.swapaxes(adj, -1, -2) != 0) | eye             # (B,T,i,j)
    e = jnp.where(mask[..., None], e, -1e30)
    e = e - e.max(axis=3, keepdims=True)
    p = jnp.exp(e)
    p = jnp.where(mask[..., None], p, 0.0)
    attn = p / p.sum(axis=3, keepdims=True)
    out = jnp.einsum('btijh,btjhc->btihc', attn, h)
    return out.reshape(B, T, N, num_heads * head_dim) + bias.reshape(-1)


if __name__ == "__main__":
    # Shapes consistent with the module: the GAT layer is GATConv(30 -> 30, heads=1)
    # applied independently to every (batch, time) graph slice.
    B, T, N, F = 4, 8, 16, 30         # batch, seq_len, num_nodes, in_features
    HIDDEN, HEADS = 30, 1             # heads=1 so output last dim == hidden_features
    HC = HIDDEN * HEADS

    key = jax.random.PRNGKey(0)
    k_x, k_adj, k_w, k_as, k_ad, k_b = jax.random.split(key, 6)

    x = jax.random.normal(k_x, (B, T, N, F), dtype=jnp.float32)
    # Random binary adjacency (0/1 floats), like a dense adj fed to dense_to_sparse.
    adj = (jax.random.uniform(k_adj, (B, T, N, N)) < 0.3).astype(jnp.float32)

    # Deterministic parameter init (glorot-ish scales; synthetic, not a checkpoint).
    w = jax.random.normal(k_w, (F, HC), dtype=jnp.float32) * (1.0 / jnp.sqrt(F))
    att_src = jax.random.normal(k_as, (HEADS, HIDDEN), dtype=jnp.float32) * 0.3
    att_dst = jax.random.normal(k_ad, (HEADS, HIDDEN), dtype=jnp.float32) * 0.3
    bias = jax.random.normal(k_b, (HC,), dtype=jnp.float32) * 0.1

    out = gat_layer_forward(x, adj, w, att_src, att_dst, bias,
                            num_heads=HEADS, head_dim=HIDDEN)
    out = jax.block_until_ready(out)

    ref = gat_reference(x, adj, w, att_src, att_dst, bias, HEADS, HIDDEN)
    assert out.shape == (B, T, N, HC), out.shape
    err = float(jnp.max(jnp.abs(out - ref)))
    assert jnp.allclose(out, ref, atol=2e-3, rtol=2e-3), err

    print("KERNEL_OK")
</pallas_src>

<mosaic_0001>
module attributes {stable_mosaic.version = 11 : i64} {
  func.func @_gat_kernel(%arg0: i32, %arg1: memref<30x128xf32, #tpu.memory_space<vmem>>, %arg2: memref<16x128xi8, #tpu.memory_space<vmem>>, %arg3: memref<30x30xf32, #tpu.memory_space<vmem>>, %arg4: memref<2x30xf32, #tpu.memory_space<vmem>>, %arg5: memref<128x16xf32, #tpu.memory_space<vmem>>, %arg6: memref<16x128xf32, #tpu.memory_space<vmem>>, %arg7: memref<128x128xf32, #tpu.memory_space<vmem>>, %arg8: memref<30x1xf32, #tpu.memory_space<vmem>>, %arg9: memref<30x128xf32, #tpu.memory_space<vmem>>) attributes {dimension_semantics = [#tpu.dimension_semantics<parallel>], iteration_bounds = array<i64: 4>, scalar_prefetch = 0 : i64, scratch_operands = 0 : i64, tpu.core_type = #tpu.core_type<tc>, window_params = [{transform_indices = @transform_0, window_bounds = array<i64: 30, 128>}, {transform_indices = @transform_1, window_bounds = array<i64: 16, 128>}, {pipeline_mode = #tpu.pipeline_mode<synchronous>, transform_indices = @transform_2, window_bounds = array<i64: 30, 30>}, {pipeline_mode = #tpu.pipeline_mode<synchronous>, transform_indices = @transform_3, window_bounds = array<i64: 2, 30>}, {pipeline_mode = #tpu.pipeline_mode<synchronous>, transform_indices = @transform_4, window_bounds = array<i64: 128, 16>}, {pipeline_mode = #tpu.pipeline_mode<synchronous>, transform_indices = @transform_5, window_bounds = array<i64: 16, 128>}, {pipeline_mode = #tpu.pipeline_mode<synchronous>, transform_indices = @transform_6, window_bounds = array<i64: 128, 128>}, {pipeline_mode = #tpu.pipeline_mode<synchronous>, transform_indices = @transform_7, window_bounds = array<i64: 30, 1>}, {transform_indices = @transform_8, window_bounds = array<i64: 30, 128>}]} {
    %c0 = arith.constant 0 : index
    %c0_0 = arith.constant 0 : index
    %0 = vector.load %arg3[%c0, %c0_0] : memref<30x30xf32, #tpu.memory_space<vmem>>, vector<30x30xf32>
    %c0_1 = arith.constant 0 : index
    %c0_2 = arith.constant 0 : index
    %1 = vector.load %arg1[%c0_1, %c0_2] : memref<30x128xf32, #tpu.memory_space<vmem>>, vector<30x128xf32>
    %cst = arith.constant dense<0.000000e+00> : vector<30x128xf32>
    %2 = tpu.matmul %0, %1, %cst {dimension_numbers = #tpu.dot_dimension_numbers<[1], [0], [0], [1], [0, 0, 1, 1], [], []>} : vector<30x30xf32>, vector<30x128xf32>, vector<30x128xf32> -> vector<30x128xf32>
    %c0_3 = arith.constant 0 : index
    %c0_4 = arith.constant 0 : index
    %3 = vector.load %arg4[%c0_3, %c0_4] : memref<2x30xf32, #tpu.memory_space<vmem>>, vector<2x30xf32>
    %cst_5 = arith.constant dense<0.000000e+00> : vector<2x128xf32>
    %4 = tpu.matmul %3, %2, %cst_5 {dimension_numbers = #tpu.dot_dimension_numbers<[1], [0], [0], [1], [0, 0, 1, 1], [], []>} : vector<2x30xf32>, vector<30x128xf32>, vector<2x128xf32> -> vector<2x128xf32>
    %c0_6 = arith.constant 0 : index
    %c0_7 = arith.constant 0 : index
    %5 = vector.load %arg2[%c0_6, %c0_7] : memref<16x128xi8, #tpu.memory_space<vmem>>, vector<16x128xi8>
    %c0_i8 = arith.constant 0 : i8
    %6 = vector.broadcast %c0_i8 : i8 to vector<16x128xi8>
    %7 = arith.cmpi ne, %5, %6 : vector<16x128xi8>
    %c0_8 = arith.constant 0 : index
    %c0_9 = arith.constant 0 : index
    %8 = vector.load %arg7[%c0_8, %c0_9] : memref<128x128xf32, #tpu.memory_space<vmem>>, vector<128x128xf32>
    %c0_10 = arith.constant 0 : index
    %c0_11 = arith.constant 0 : index
    %9 = vector.load %arg5[%c0_10, %c0_11] : memref<128x16xf32, #tpu.memory_space<vmem>>, vector<128x16xf32>
    %c0_12 = arith.constant 0 : index
    %c0_13 = arith.constant 0 : index
    %10 = vector.load %arg6[%c0_12, %c0_13] : memref<16x128xf32, #tpu.memory_space<vmem>>, vector<16x128xf32>
    %11 = vector.extract_strided_slice %4 {offsets = [0, 0], sizes = [1, 128], strides = [1, 1]} : vector<2x128xf32> to vector<1x128xf32>
    %12 = vector.extract_strided_slice %4 {offsets = [1, 0], sizes = [1, 128], strides = [1, 1]} : vector<2x128xf32> to vector<1x128xf32>
    %13 = vector.broadcast %11 : vector<1x128xf32> to vector<16x128xf32>
    %14 = arith.mulf %10, %13 : vector<16x128xf32>
    %cst_14 = arith.constant dense<0.000000e+00> : vector<16x128xf32>
    %15 = tpu.matmul %14, %8, %cst_14 {dimension_numbers = #tpu.dot_dimension_numbers<[1], [0], [0], [1], [0, 0, 1, 1], [], []>} : vector<16x128xf32>, vector<128x128xf32>, vector<16x128xf32> -> vector<16x128xf32>
    %16 = vector.broadcast %12 : vector<1x128xf32> to vector<16x128xf32>
    %17 = arith.addf %15, %16 : vector<16x128xf32>
    %cst_15 = arith.constant 2.000000e-01 : f32
    %18 = vector.broadcast %cst_15 : f32 to vector<16x128xf32>
    %19 = arith.mulf %18, %17 : vector<16x128xf32>
    %20 = arith.maximumf %17, %19 : vector<16x128xf32>
    %cst_16 = arith.constant -1.000000e+30 : f32
    %21 = vector.broadcast %cst_16 : f32 to vector<16x128xf32>
    %22 = arith.select %7, %20, %21 : vector<16x128xi1>, vector<16x128xf32>
    %cst_17 = arith.constant dense<0xFF800000> : vector<128xf32>
    %23 = vector.multi_reduction <maximumf>, %22, %cst_17 [0] : vector<16x128xf32> to vector<128xf32>
    %24 = vector.shape_cast %23 : vector<128xf32> to vector<1x128xf32>
    %25 = vector.broadcast %24 : vector<1x128xf32> to vector<16x128xf32>
    %26 = arith.subf %22, %25 : vector<16x128xf32>
    %27 = math.exp %26 : vector<16x128xf32>
    %cst_18 = arith.constant dense<0.000000e+00> : vector<128xf32>
    %28 = vector.multi_reduction <add>, %27, %cst_18 [0] : vector<16x128xf32> to vector<128xf32>
    %29 = vector.shape_cast %28 : vector<128xf32> to vector<1x128xf32>
    %30 = tpu.reciprocal %29 : vector<1x128xf32> -> vector<1x128xf32>
    %31 = vector.broadcast %30 : vector<1x128xf32> to vector<16x128xf32>
    %32 = arith.mulf %27, %31 : vector<16x128xf32>
    %cst_19 = arith.constant dense<0.000000e+00> : vector<128x128xf32>
    %33 = tpu.matmul %9, %32, %cst_19 {dimension_numbers = #tpu.dot_dimension_numbers<[1], [0], [0], [1], [0, 0, 1, 1], [], []>} : vector<128x16xf32>, vector<16x128xf32>, vector<128x128xf32> -> vector<128x128xf32>
    %34 = arith.mulf %33, %8 : vector<128x128xf32>
    %cst_20 = arith.constant dense<0.000000e+00> : vector<30x128xf32>
    %35 = tpu.matmul %2, %34, %cst_20 {dimension_numbers = #tpu.dot_dimension_numbers<[1], [0], [0], [1], [0, 0, 1, 1], [], []>} : vector<30x128xf32>, vector<128x128xf32>, vector<30x128xf32> -> vector<30x128xf32>
    %c0_21 = arith.constant 0 : index
    %c0_22 = arith.constant 0 : index
    %36 = vector.load %arg8[%c0_21, %c0_22] : memref<30x1xf32, #tpu.memory_space<vmem>>, vector<30x1xf32>
    %37 = vector.broadcast %36 : vector<30x1xf32> to vector<30x128xf32>
    %38 = arith.addf %35, %37 : vector<30x128xf32>
    %c0_23 = arith.constant 0 : index
    %c0_24 = arith.constant 0 : index
    %39 = vector.load %arg9[%c0_23, %c0_24] : memref<30x128xf32, #tpu.memory_space<vmem>>, vector<30x128xf32>
    tpu.vector_store %arg9[%c0_23, %c0_24], %38 {strides = array<i32>} : memref<30x128xf32, #tpu.memory_space<vmem>>, vector<30x128xf32>,
    return
  }
  func.func @transform_0(%arg0: i32) -> (i32, i32) {
    %c0_i32 = arith.constant 0 : i32
    %c0_i32_0 = arith.constant 0 : i32
    return %c0_i32, %arg0 : i32, i32
  }
  func.func @transform_1(%arg0: i32) -> (i32, i32) {
    %c0_i32 = arith.constant 0 : i32
    %c0_i32_0 = arith.constant 0 : i32
    return %c0_i32, %arg0 : i32, i32
  }
  func.func @transform_2(%arg0: i32) -> (i32, i32) {
    %c0_i32 = arith.constant 0 : i32
    %c0_i32_0 = arith.constant 0 : i32
    %c0_i32_1 = arith.constant 0 : i32
    return %c0_i32, %c0_i32_0 : i32, i32
  }
  func.func @transform_3(%arg0: i32) -> (i32, i32) {
    %c0_i32 = arith.constant 0 : i32
    %c0_i32_0 = arith.constant 0 : i32
    %c0_i32_1 = arith.constant 0 : i32
    return %c0_i32, %c0_i32_0 : i32, i32
  }
  func.func @transform_4(%arg0: i32) -> (i32, i32) {
    %c0_i32 = arith.constant 0 : i32
    %c0_i32_0 = arith.constant 0 : i32
    %c0_i32_1 = arith.constant 0 : i32
    return %c0_i32, %c0_i32_0 : i32, i32
  }
  func.func @transform_5(%arg0: i32) -> (i32, i32) {
    %c0_i32 = arith.constant 0 : i32
    %c0_i32_0 = arith.constant 0 : i32
    %c0_i32_1 = arith.constant 0 : i32
    return %c0_i32, %c0_i32_0 : i32, i32
  }
  func.func @transform_6(%arg0: i32) -> (i32, i32) {
    %c0_i32 = arith.constant 0 : i32
    %c0_i32_0 = arith.constant 0 : i32
    %c0_i32_1 = arith.constant 0 : i32
    return %c0_i32, %c0_i32_0 : i32, i32
  }
  func.func @transform_7(%arg0: i32) -> (i32, i32) {
    %c0_i32 = arith.constant 0 : i32
    %c0_i32_0 = arith.constant 0 : i32
    %c0_i32_1 = arith.constant 0 : i32
    return %c0_i32, %c0_i32_0 : i32, i32
  }
  func.func @transform_8(%arg0: i32) -> (i32, i32) {
    %c0_i32 = arith.constant 0 : i32
    %c0_i32_0 = arith.constant 0 : i32
    return %c0_i32, %arg0 : i32, i32
  }
}

</mosaic_0001>

<llo_original>
// kernel: gat_layer_forward.1
$region0: #{gat_layer_forward.1}
  #allocation0 [shape = 'u32[]', space=smem, size = 0x4, offset = 0x4, fixed_abs, tag = 'smem constant byte address 0x4 - core index']
  #allocation1 [shape = 'u32[144,128]{1,0:T(1,128)}', space=vmem, size = 0x12000, scoped, tag = 'internal scratch']
  %s0 = inlined_call_operand.vmem [shape: f32[30,512], index: 0, kind: input, shape index: {}]
  %s1 = inlined_call_operand.vmem [shape: s8[16,512], index: 1, kind: input, shape index: {}]
  %s2 = inlined_call_operand.vmem [shape: f32[30,30], index: 2, kind: input, shape index: {}]
  %s3 = inlined_call_operand.vmem [shape: f32[2,30], index: 3, kind: input, shape index: {}]
  %s4 = inlined_call_operand.vmem [shape: f32[128,16], index: 4, kind: input, shape index: {}]
  %s5 = inlined_call_operand.vmem [shape: f32[16,128], index: 5, kind: input, shape index: {}]
  %s6 = inlined_call_operand.vmem [shape: f32[128,128], index: 6, kind: input, shape index: {}]
  %s7 = inlined_call_operand.vmem [shape: f32[30,1], index: 7, kind: input, shape index: {}]
  %s8 = inlined_call_operand.vmem [shape: f32[30,512], index: 8, kind: output, shape index: {}]
  %s9 = sld [smem:[#allocation0]]
  $region171: #{gat_layer_forward.1} parent=0
    _
  %s11 = ssub.s32 1, %s9
  %s12 = scalar_select 0, %s11, %s9
  $region1: #{gat_layer_forward.1} parent=0
    #allocation2 [shape = 'u8[32768]{0}', space=vmem, size = 0x8000, scoped, tag = 'input window, operand 0']
    #allocation3 [shape = 'u8[4096]{0}', space=vmem, size = 0x1000, scoped, tag = 'input window, operand 1']
    #allocation4 [shape = 'u8[32768]{0}', space=vmem, size = 0x8000, scoped, tag = 'output window, operand 0']
    loop: start=0, step=1, limit=6
    $region2: #{gat_layer_forward.1} parent=1 // loop_pre_header
      _
    $region3: #{gat_layer_forward.1} parent=1 // loop_header
      %s14 = sphi 0, %s18
      %p15 = scmp.ge.s32.totalorder %s14, 6
      %s24 = sphi 0, %s26
      %s27 = sphi 0, %s24
      %s28 = sphi 0, %s27
      %s44 = sphi 0, %s28
      %s50 = sphi 0, %s52
      %s53 = sphi 0, %s50
      %s54 = sphi 0, %s53
      %s70 = sphi 0, %s54
      %s74 = sphi 0, %s74
      %s76 = sphi 0, %s74
      %s77 = sphi 0, %s76
      %s91 = sphi 0, %s77
      %s95 = sphi 0, %s95
      %s97 = sphi 0, %s95
      %s98 = sphi 0, %s97
      %s112 = sphi 0, %s98
      %s116 = sphi 0, %s116
      %s118 = sphi 0, %s116
      %s119 = sphi 0, %s118
      %s133 = sphi 0, %s119
      %s137 = sphi 0, %s137
      %s139 = sphi 0, %s137
      %s140 = sphi 0, %s139
      %s154 = sphi 0, %s140
      %s158 = sphi 0, %s158
      %s160 = sphi 0, %s158
      %s161 = sphi 0, %s160
      %s175 = sphi 0, %s161
      %s179 = sphi 0, %s179
      %s181 = sphi 0, %s179
      %s182 = sphi 0, %s181
      %s196 = sphi 0, %s182
      %s202 = sphi 0, %s204
      %s205 = sphi 0, %s202
      %s206 = sphi 0, %s205
      %s222 = sphi 0, %s206
    $region4: #{gat_layer_forward.1} parent=1 // loop_header_branch
      %17 = sbr.rel (%p15) target = $region8
    $region5: #{gat_layer_forward.1} parent=1 // loop_body
      %s19 = ssub.s32 %s14, 1
      %s20 = ssub.s32 %s14, 2
      %s21 = sadd.s32 %s14, 1
      %s22 = ssub.s32 %s14, %s21
      %p23 = scmp.eq.s32.totalorder %s22, 0
      %s25 = sadd.s32 %s24, 1
      %s26 = scalar_select %p23, %s24, %s25
      %p29 = pneg %p23
      %p30 = scmp.eq.s32.totalorder %s14, 3
      %p31 = por %p29, %p30
      %p32 = scmp.ne.s32.totalorder %s24, %s27
      %p33 = scmp.eq.s32.totalorder %s14, 0
      %p34 = por %p32, %p33
      %p35 = scmp.ne.s32.totalorder %s24, %s27
      %p36 = scmp.eq.s32.totalorder %s19, 3
      %p37 = por %p35, %p36
      %p38 = scmp.ne.s32.totalorder %s27, %s28
      %p39 = scmp.eq.s32.totalorder %s19, 0
      %p40 = por %p38, %p39
      %p41 = scmp.ne.s32.totalorder %s27, %s28
      %p42 = scmp.eq.s32.totalorder %s20, 3
      %p43 = por %p41, %p42
      %p45 = scmp.ne.s32.totalorder %s28, %s44
      %p46 = scmp.eq.s32.totalorder %s20, 0
      %p47 = por %p45, %p46
      %s48 = ssub.s32 %s14, %s21
      %p49 = scmp.eq.s32.totalorder %s48, 0
      %s51 = sadd.s32 %s50, 1
      %s52 = scalar_select %p49, %s50, %s51
      %p55 = pneg %p49
      %p56 = scmp.eq.s32.totalorder %s14, 3
      %p57 = por %p55, %p56
      %p58 = scmp.ne.s32.totalorder %s50, %s53
      %p59 = scmp.eq.s32.totalorder %s14, 0
      %p60 = por %p58, %p59
      %p61 = scmp.ne.s32.totalorder %s50, %s53
      %p62 = scmp.eq.s32.totalorder %s19, 3
      %p63 = por %p61, %p62
      %p64 = scmp.ne.s32.totalorder %s53, %s54
      %p65 = scmp.eq.s32.totalorder %s19, 0
      %p66 = por %p64, %p65
      %p67 = scmp.ne.s32.totalorder %s53, %s54
      %p68 = scmp.eq.s32.totalorder %s20, 3
      %p69 = por %p67, %p68
      %p71 = scmp.ne.s32.totalorder %s54, %s70
      %p72 = scmp.eq.s32.totalorder %s20, 0
      %p73 = por %p71, %p72
      %s75 = sadd.s32 %s74, 1
      %p78 = scmp.eq.s32.totalorder %s14, 3
      %p79 = scmp.ne.s32.totalorder %s74, %s76
      %p80 = scmp.eq.s32.totalorder %s14, 0
      %p81 = por %p79, %p80
      %p82 = scmp.ne.s32.totalorder %s74, %s76
      %p83 = scmp.eq.s32.totalorder %s19, 3
      %p84 = por %p82, %p83
      %p85 = scmp.ne.s32.totalorder %s76, %s77
      %p86 = scmp.eq.s32.totalorder %s19, 0
      %p87 = por %p85, %p86
      %p88 = scmp.ne.s32.totalorder %s76, %s77
      %p89 = scmp.eq.s32.totalorder %s20, 3
      %p90 = por %p88, %p89
      %p92 = scmp.ne.s32.totalorder %s77, %s91
      %p93 = scmp.eq.s32.totalorder %s20, 0
      %p94 = por %p92, %p93
      %s96 = sadd.s32 %s95, 1
      %p99 = scmp.eq.s32.totalorder %s14, 3
      %p100 = scmp.ne.s32.totalorder %s95, %s97
      %p101 = scmp.eq.s32.totalorder %s14, 0
      %p102 = por %p100, %p101
      %p103 = scmp.ne.s32.totalorder %s95, %s97
      %p104 = scmp.eq.s32.totalorder %s19, 3
      %p105 = por %p103, %p104
      %p106 = scmp.ne.s32.totalorder %s97, %s98
      %p107 = scmp.eq.s32.totalorder %s19, 0
      %p108 = por %p106, %p107
      %p109 = scmp.ne.s32.totalorder %s97, %s98
      %p110 = scmp.eq.s32.totalorder %s20, 3
      %p111 = por %p109, %p110
      %p113 = scmp.ne.s32.totalorder %s98, %s112
      %p114 = scmp.eq.s32.totalorder %s20, 0
      %p115 = por %p113, %p114
      %s117 = sadd.s32 %s116, 1
      %p120 = scmp.eq.s32.totalorder %s14, 3
      %p121 = scmp.ne.s32.totalorder %s116, %s118
      %p122 = scmp.eq.s32.totalorder %s14, 0
      %p123 = por %p121, %p122
      %p124 = scmp.ne.s32.totalorder %s116, %s118
      %p125 = scmp.eq.s32.totalorder %s19, 3
      %p126 = por %p124, %p125
      %p127 = scmp.ne.s32.totalorder %s118, %s119
      %p128 = scmp.eq.s32.totalorder %s19, 0
      %p129 = por %p127, %p128
      %p130 = scmp.ne.s32.totalorder %s118, %s119
      %p131 = scmp.eq.s32.totalorder %s20, 3
      %p132 = por %p130, %p131
      %p134 = scmp.ne.s32.totalorder %s119, %s133
      %p135 = scmp.eq.s32.totalorder %s20, 0
      %p136 = por %p134, %p135
      %s138 = sadd.s32 %s137, 1
      %p141 = scmp.eq.s32.totalorder %s14, 3
      %p142 = scmp.ne.s32.totalorder %s137, %s139
      %p143 = scmp.eq.s32.totalorder %s14, 0
      %p144 = por %p142, %p143
      %p145 = scmp.ne.s32.totalorder %s137, %s139
      %p146 = scmp.eq.s32.totalorder %s19, 3
      %p147 = por %p145, %p146
      %p148 = scmp.ne.s32.totalorder %s139, %s140
      %p149 = scmp.eq.s32.totalorder %s19, 0
      %p150 = por %p148, %p149
      %p151 = scmp.ne.s32.totalorder %s139, %s140
      %p152 = scmp.eq.s32.totalorder %s20, 3
      %p153 = por %p151, %p152
      %p155 = scmp.ne.s32.totalorder %s140, %s154
      %p156 = scmp.eq.s32.totalorder %s20, 0
      %p157 = por %p155, %p156
      %s159 = sadd.s32 %s158, 1
      %p162 = scmp.eq.s32.totalorder %s14, 3
      %p163 = scmp.ne.s32.totalorder %s158, %s160
      %p164 = scmp.eq.s32.totalorder %s14, 0
      %p165 = por %p163, %p164
      %p166 = scmp.ne.s32.totalorder %s158, %s160
      %p167 = scmp.eq.s32.totalorder %s19, 3
      %p168 = por %p166, %p167
      %p169 = scmp.ne.s32.totalorder %s160, %s161
      %p170 = scmp.eq.s32.totalorder %s19, 0
      %p171 = por %p169, %p170
      %p172 = scmp.ne.s32.totalorder %s160, %s161
      %p173 = scmp.eq.s32.totalorder %s20, 3
      %p174 = por %p172, %p173
      %p176 = scmp.ne.s32.totalorder %s161, %s175
      %p177 = scmp.eq.s32.totalorder %s20, 0
      %p178 = por %p176, %p177
      %s180 = sadd.s32 %s179, 1
      %p183 = scmp.eq.s32.totalorder %s14, 3
      %p184 = scmp.ne.s32.totalorder %s179, %s181
      %p185 = scmp.eq.s32.totalorder %s14, 0
      %p186 = por %p184, %p185
      %p187 = scmp.ne.s32.totalorder %s179, %s181
      %p188 = scmp.eq.s32.totalorder %s19, 3
      %p189 = por %p187, %p188
      %p190 = scmp.ne.s32.totalorder %s181, %s182
      %p191 = scmp.eq.s32.totalorder %s19, 0
      %p192 = por %p190, %p191
      %p193 = scmp.ne.s32.totalorder %s181, %s182
      %p194 = scmp.eq.s32.totalorder %s20, 3
      %p195 = por %p193, %p194
      %p197 = scmp.ne.s32.totalorder %s182, %s196
      %p198 = scmp.eq.s32.totalorder %s20, 0
      %p199 = por %p197, %p198
      %s200 = ssub.s32 %s14, %s21
      %p201 = scmp.eq.s32.totalorder %s200, 0
      %s203 = sadd.s32 %s202, 1
      %s204 = scalar_select %p201, %s202, %s203
      %p207 = pneg %p201
      %p208 = scmp.eq.s32.totalorder %s14, 3
      %p209 = por %p207, %p208
      %p210 = scmp.ne.s32.totalorder %s202, %s205
      %p211 = scmp.eq.s32.totalorder %s14, 0
      %p212 = por %p210, %p211
      %p213 = scmp.ne.s32.totalorder %s202, %s205
      %p214 = scmp.eq.s32.totalorder %s19, 3
      %p215 = por %p213, %p214
      %p216 = scmp.ne.s32.totalorder %s205, %s206
      %p217 = scmp.eq.s32.totalorder %s19, 0
      %p218 = por %p216, %p217
      %p219 = scmp.ne.s32.totalorder %s205, %s206
      %p220 = scmp.eq.s32.totalorder %s20, 3
      %p221 = por %p219, %p220
      %p223 = scmp.ne.s32.totalorder %s206, %s222
      %p224 = scmp.eq.s32.totalorder %s20, 0
      %p225 = por %p223, %p224
      %p226 = scmp.le.s32.totalorder 1, %s14
      %p227 = scmp.lt.s32.totalorder %s14, 5
      %p228 = pnand %p226, %p227
      %p229 = pneg %p228
      // Predicated region
      $region9: #{gat_layer_forward.1} parent=5 // pred_check
        _
      $region10: #{gat_layer_forward.1} parent=5 // pred_check_branch
        %231 = sbr.rel (%p228) target = $region12
      $region11: #{gat_layer_forward.1} parent=5 // pred_region
        %s232 = ssub.s32 %s14, 1
        // Predicated region
        $region13: #{gat_layer_forward.1} parent=11 // pred_check
          %p233 = pneg %p87
        $region14: #{gat_layer_forward.1} parent=11 // pred_check_branch
          %235 = sbr.rel (%p233) target = $region16
        $region15: #{gat_layer_forward.1} parent=11 // pred_region
          _
        $region16: #{gat_layer_forward.1} parent=11 // pred_fallthru
          _
        // Predicated region
        $region17: #{gat_layer_forward.1} parent=11 // pred_check
          %p236 = pneg %p108
        $region18: #{gat_layer_forward.1} parent=11 // pred_check_branch
          %238 = sbr.rel (%p236) target = $region20
        $region19: #{gat_layer_forward.1} parent=11 // pred_region
          _
        $region20: #{gat_layer_forward.1} parent=11 // pred_fallthru
          _
        // Predicated region
        $region21: #{gat_layer_forward.1} parent=11 // pred_check
          %p239 = pneg %p129
        $region22: #{gat_layer_forward.1} parent=11 // pred_check_branch
          %241 = sbr.rel (%p239) target = $region24
        $region23: #{gat_layer_forward.1} parent=11 // pred_region
          _
        $region24: #{gat_layer_forward.1} parent=11 // pred_fallthru
          _
        // Predicated region
        $region25: #{gat_layer_forward.1} parent=11 // pred_check
          %p242 = pneg %p150
        $region26: #{gat_layer_forward.1} parent=11 // pred_check_branch
          %244 = sbr.rel (%p242) target = $region28
        $region27: #{gat_layer_forward.1} parent=11 // pred_region
          _
        $region28: #{gat_layer_forward.1} parent=11 // pred_fallthru
          _
        // Predicated region
        $region29: #{gat_layer_forward.1} parent=11 // pred_check
          %p245 = pneg %p171
        $region30: #{gat_layer_forward.1} parent=11 // pred_check_branch
          %247 = sbr.rel (%p245) target = $region32
        $region31: #{gat_layer_forward.1} parent=11 // pred_region
          _
        $region32: #{gat_layer_forward.1} parent=11 // pred_fallthru
          _
        // Predicated region
        $region33: #{gat_layer_forward.1} parent=11 // pred_check
          %p248 = pneg %p192
        $region34: #{gat_layer_forward.1} parent=11 // pred_check_branch
          %250 = sbr.rel (%p248) target = $region36
        $region35: #{gat_layer_forward.1} parent=11 // pred_region
          _
        $region36: #{gat_layer_forward.1} parent=11 // pred_fallthru
          _
      $region12: #{gat_layer_forward.1} parent=5 // pred_fallthru
        _
      %p251 = scmp.lt.s32.totalorder %s14, 4
      // Predicated region
      $region37: #{gat_layer_forward.1} parent=5 // pred_check
        %p252 = pneg %p251
      $region38: #{gat_layer_forward.1} parent=5 // pred_check_branch
        %254 = sbr.rel (%p252) target = $region40
      $region39: #{gat_layer_forward.1} parent=5 // pred_region
        // Predicated region
        $region41: #{gat_layer_forward.1} parent=39 // pred_check
          %p255 = pneg %p34
        $region42: #{gat_layer_forward.1} parent=39 // pred_check_branch
          %257 = sbr.rel (%p255) target = $region44
        $region43: #{gat_layer_forward.1} parent=39 // pred_region
          %s258 = sand.u32 %s24, 1
          %s259 = sand.u32 %s24, 1
          %s260 = smul.addr %s259, 32
          %s261 = scalar_lea.vmem [#allocation2], %s260
          %s262 = smul.addr %s14, 8
          %s263 = scalar_lea.vmem %s0, %s262
          // Predicated region
          $region45: #{gat_layer_forward.1} parent=43 // pred_check
            _
          $region46: #{gat_layer_forward.1} parent=43 // pred_check_branch
            %265 = sbr.rel (0) target = $region48
          $region47: #{gat_layer_forward.1} parent=43 // pred_region
            // Predicated region
            $region49: #{gat_layer_forward.1} parent=47 // pred_check
              _
            $region50: #{gat_layer_forward.1} parent=47 // pred_check_branch
              %267 = sbr.rel (0) target = $region52
            $region51: #{gat_layer_forward.1} parent=47 // pred_region
              // Predicated region
              $region64: #{gat_layer_forward.1} parent=51 // pred_check
                _
              $region65: #{gat_layer_forward.1} parent=51 // pred_check_branch
                %288 = sbr.rel (0) target = $region67
              $region66: #{gat_layer_forward.1} parent=51 // pred_region
                loop: start=0, step=1, limit=1
                $region68: #{gat_layer_forward.1} parent=66 // loop_pre_header
                  _
                $region69: #{gat_layer_forward.1} parent=66 // loop_header
                  %s290 = sphi 0, %s294
                  %p291 = scmp.ge.s32.totalorder %s290, 1
                  %s295 = sphi %s263, %s263
                  %s296 = sphi %s261, %s261
                $region70: #{gat_layer_forward.1} parent=66 // loop_header_branch
                  %293 = sbr.rel (%p291) target = $region74
                $region71: #{gat_layer_forward.1} parent=66 // loop_body
                  %v297 = vld [vmem:[%s295] sm:$0xff]
                  %298 = vst [vmem:[%s296] sm:$0xff] %v297
                  %v299 = vld [vmem:[%s295 + $0x20] sm:$0xff]
                  %300 = vst [vmem:[%s296 + $0x8] sm:$0xff] %v299
                  %v301 = vld [vmem:[%s295 + $0x40] sm:$0xff]
                  %302 = vst [vmem:[%s296 + $0x10] sm:$0xff] %v301
                  %v303 = vld [vmem:[%s295 + $0x60] sm:$0xff]
                  %304 = vst [vmem:[%s296 + $0x18] sm:$0xff] %v303
                $region72: #{gat_layer_forward.1} parent=66 // loop_footer
                  %s294 = sadd.s32 1, %s290
                $region73: #{gat_layer_forward.1} parent=66 // loop_footer_branch
                  %289 = sbr.rel target = $region69
                $region74: #{gat_layer_forward.1} parent=66 // loop_exit
                  _
              $region67: #{gat_layer_forward.1} parent=51 // pred_fallthru
                _
              // Predicated region
              $region75: #{gat_layer_forward.1} parent=51 // pred_check
                _
              $region76: #{gat_layer_forward.1} parent=51 // pred_check_branch
                %306 = sbr.rel target = $region78
              $region77: #{gat_layer_forward.1} parent=51 // pred_region
                _
              $region78: #{gat_layer_forward.1} parent=51 // pred_fallthru
                _
            $region52: #{gat_layer_forward.1} parent=47 // pred_fallthru
              _
            // Predicated region
            $region53: #{gat_layer_forward.1} parent=47 // pred_check
              _
            $region54: #{gat_layer_forward.1} parent=47 // pred_check_branch
              %269 = sbr.rel target = $region56
            $region55: #{gat_layer_forward.1} parent=47 // pred_region
              loop: start=0, step=1, limit=1
              $region57: #{gat_layer_forward.1} parent=55 // loop_pre_header
                _
              $region58: #{gat_layer_forward.1} parent=55 // loop_header
                %s272 = sphi 0, %s276
                %p273 = scmp.ge.s32.totalorder %s272, 1
                %s277 = sphi %s263, %s263
                %s278 = sphi %s261, %s261
              $region59: #{gat_layer_forward.1} parent=55 // loop_header_branch
                %275 = sbr.rel (%p273) target = $region63
              $region60: #{gat_layer_forward.1} parent=55 // loop_body
                %v279 = vld [vmem:[%s277] sm:$0xff]
                %280 = vst [vmem:[%s278] sm:$0xff] %v279
                %v281 = vld [vmem:[%s277 + $0x20] sm:$0xff]
                %282 = vst [vmem:[%s278 + $0x8] sm:$0xff] %v281
                %v283 = vld [vmem:[%s277 + $0x40] sm:$0xff]
                %284 = vst [vmem:[%s278 + $0x10] sm:$0xff] %v283
                %v285 = vld [vmem:[%s277 + $0x60] sm:$0xff]
                %286 = vst [vmem:[%s278 + $0x18] sm:$0xff] %v285
              $region61: #{gat_layer_forward.1} parent=55 // loop_footer
                %s276 = sadd.s32 1, %s272
              $region62: #{gat_layer_forward.1} parent=55 // loop_footer_branch
                %271 = sbr.rel target = $region58
              $region63: #{gat_layer_forward.1} parent=55 // loop_exit
                _
            $region56: #{gat_layer_forward.1} parent=47 // pred_fallthru
              _
          $region48: #{gat_layer_forward.1} parent=43 // pred_fallthru
            _
          %307 = vnop
        $region44: #{gat_layer_forward.1} parent=39 // pred_fallthru
          _
        // Predicated region
        $region79: #{gat_layer_forward.1} parent=39 // pred_check
          %p308 = pneg %p60
        $region80: #{gat_layer_forward.1} parent=39 // pred_check_branch
          %310 = sbr.rel (%p308) target = $region82
        $region81: #{gat_layer_forward.1} parent=39 // pred_region
          %s311 = sand.u32 %s50, 1
          %s312 = sand.u32 %s50, 1
          %s313 = smul.addr %s312, 4
          %s314 = scalar_lea.vmem [#allocation3], %s313
          %s315 = smul.addr %s14, 2
          %s316 = scalar_lea.vmem %s1, %s315
          // Predicated region
          $region83: #{gat_layer_forward.1} parent=81 // pred_check
            _
          $region84: #{gat_layer_forward.1} parent=81 // pred_check_branch
            %318 = sbr.rel (0) target = $region86
          $region85: #{gat_layer_forward.1} parent=81 // pred_region
            // Predicated region
            $region87: #{gat_layer_forward.1} parent=85 // pred_check
              _
            $region88: #{gat_layer_forward.1} parent=85 // pred_check_branch
              %320 = sbr.rel target = $region90
            $region89: #{gat_layer_forward.1} parent=85 // pred_region
              // Predicated region
              $region102: #{gat_layer_forward.1} parent=89 // pred_check
                _
              $region103: #{gat_layer_forward.1} parent=89 // pred_check_branch
                %337 = sbr.rel (0) target = $region105
              $region104: #{gat_layer_forward.1} parent=89 // pred_region
                loop: start=0, step=1, limit=1
                $region106: #{gat_layer_forward.1} parent=104 // loop_pre_header
                  _
                $region107: #{gat_layer_forward.1} parent=104 // loop_header
                  %s340 = sphi 0, %s344
                  %p341 = scmp.ge.s32.totalorder %s340, 1
                  %s345 = sphi %s316, %s316
                  %s346 = sphi %s314, %s314
                $region108: #{gat_layer_forward.1} parent=104 // loop_header_branch
                  %343 = sbr.rel (%p341) target = $region112
                $region109: #{gat_layer_forward.1} parent=104 // loop_body
                  %v347 = vld [vmem:[%s345] sm:$0x3]
                  %348 = vst [vmem:[%s346] sm:$0x3] %v347
                  %v349 = vld [vmem:[%s345 + $0x8] sm:$0x3]
                  %350 = vst [vmem:[%s346 + $0x2] sm:$0x3] %v349
                $region110: #{gat_layer_forward.1} parent=104 // loop_footer
                  %s344 = sadd.s32 1, %s340
                $region111: #{gat_layer_forward.1} parent=104 // loop_footer_branch
                  %339 = sbr.rel target = $region107
                $region112: #{gat_layer_forward.1} parent=104 // loop_exit
                  _
              $region105: #{gat_layer_forward.1} parent=89 // pred_fallthru
                _
            $region90: #{gat_layer_forward.1} parent=85 // pred_fallthru
              _
            // Predicated region
            $region91: #{gat_layer_forward.1} parent=85 // pred_check
              _
            $region92: #{gat_layer_forward.1} parent=85 // pred_check_branch
              %322 = sbr.rel (0) target = $region94
            $region93: #{gat_layer_forward.1} parent=85 // pred_region
              loop: start=0, step=1, limit=1
              $region95: #{gat_layer_forward.1} parent=93 // loop_pre_header
                _
              $region96: #{gat_layer_forward.1} parent=93 // loop_header
                %s325 = sphi 0, %s329
                %p326 = scmp.ge.s32.totalorder %s325, 1
                %s330 = sphi %s316, %s316
                %s331 = sphi %s314, %s314
              $region97: #{gat_layer_forward.1} parent=93 // loop_header_branch
                %328 = sbr.rel (%p326) target = $region101
              $region98: #{gat_layer_forward.1} parent=93 // loop_body
                %v332 = vld [vmem:[%s330] sm:$0x3]
                %333 = vst [vmem:[%s331] sm:$0x3] %v332
                %v334 = vld [vmem:[%s330 + $0x8] sm:$0x3]
                %335 = vst [vmem:[%s331 + $0x2] sm:$0x3] %v334
              $region99: #{gat_layer_forward.1} parent=93 // loop_footer
                %s329 = sadd.s32 1, %s325
              $region100: #{gat_layer_forward.1} parent=93 // loop_footer_branch
                %324 = sbr.rel target = $region96
              $region101: #{gat_layer_forward.1} parent=93 // loop_exit
                _
            $region94: #{gat_layer_forward.1} parent=85 // pred_fallthru
              _
          $region86: #{gat_layer_forward.1} parent=81 // pred_fallthru
            _
          %351 = vnop
        $region82: #{gat_layer_forward.1} parent=39 // pred_fallthru
          _
      $region40: #{gat_layer_forward.1} parent=5 // pred_fallthru
        _
      %p352 = scmp.le.s32.totalorder 1, %s14
      %p353 = scmp.lt.s32.totalorder %s14, 5
      %p354 = pnand %p352, %p353
      %p355 = pneg %p354
      // Predicated region
      $region113: #{gat_layer_forward.1} parent=5 // pred_check
        _
      $region114: #{gat_layer_forward.1} parent=5 // pred_check_branch
        %357 = sbr.rel (%p354) target = $region116
      $region115: #{gat_layer_forward.1} parent=5 // pred_region
        %s358 = ssub.s32 %s14, 1
        %s359 = sand.u32 %s27, 1
        %s360 = sand.u32 %s27, 1
        %s361 = smul.addr %s360, 32
        %s362 = scalar_lea.vmem [#allocation2], %s361
        // Predicated region
        $region117: #{gat_layer_forward.1} parent=115 // pred_check
          %p363 = pneg %p40
        $region118: #{gat_layer_forward.1} parent=115 // pred_check_branch
          %365 = sbr.rel (%p363) target = $region120
        $region119: #{gat_layer_forward.1} parent=115 // pred_region
          _
        $region120: #{gat_layer_forward.1} parent=115 // pred_fallthru
          _
        %s366 = sand.u32 %s53, 1
        %s367 = sand.u32 %s53, 1
        %s368 = smul.addr %s367, 4
        %s369 = scalar_lea.vmem [#allocation3], %s368
        // Predicated region
        $region121: #{gat_layer_forward.1} parent=115 // pred_check
          %p370 = pneg %p66
        $region122: #{gat_layer_forward.1} parent=115 // pred_check_branch
          %372 = sbr.rel (%p370) target = $region124
        $region123: #{gat_layer_forward.1} parent=115 // pred_region
          _
        $region124: #{gat_layer_forward.1} parent=115 // pred_fallthru
          _
        %s373 = sand.u32 %s27, 1
        %s374 = sand.u32 %s27, 1
        %s375 = smul.addr %s374, 32
        %s376 = scalar_lea.vmem [#allocation2], %s375
        %p377 = pneg %p40
        %p378 = pneg %p37
        %s379 = sand.u32 %s53, 1
        %s380 = sand.u32 %s53, 1
        %s381 = smul.addr %s380, 4
        %s382 = scalar_lea.vmem [#allocation3], %s381
        %p383 = pneg %p66
        %p384 = pneg %p63
        %p385 = pneg %p87
        %p386 = pneg %p84
        %p387 = pneg %p108
        %p388 = pneg %p105
        %p389 = pneg %p129
        %p390 = pneg %p126
        %p391 = pneg %p150
        %p392 = pneg %p147
        %p393 = pneg %p171
        %p394 = pneg %p168
        %p395 = pneg %p192
        %p396 = pneg %p189
        %p397 = pneg %p218
        %p398 = pneg %p215
        %s399 = sand.u32 %s205, 1
        %s400 = sand.u32 %s205, 1
        %s401 = smul.addr %s400, 32
        %s402 = scalar_lea.vmem [#allocation4], %s401
        %v405 = vld [vmem:[%s2] sm:$0xff]
        %v406 = vld [vmem:[%s2 + $0x8] sm:$0xff]
        %v407 = vld [vmem:[%s2 + $0x10] sm:$0xff]
        %v408 = vld [vmem:[%s2 + $0x18] sm:$0x3f]
        %v409 = vld [vmem:[%s362] sm:$0xff]
        %v410 = vld [vmem:[%s362 + $0x8] sm:$0xff]
        %v411 = vld [vmem:[%s362 + $0x10] sm:$0xff]
        %v412 = vld [vmem:[%s362 + $0x18] sm:$0x3f]
        %vm413 = vcmask 244736
        %v415 = vsel %vm413, %v405, 0
        %v418 = vsel %vm413, %v406, 0
        %v421 = vsel %vm413, %v407, 0
        %v424 = vsel %vm413, %v408, 0
        %vm426 = vcmask 1045504
        %v428 = vsel %vm426, %v412, 0
        %430 = vmatprep.subr.mxu0 0.0
        %431 = vmatpush1.msra.mxu0 %v409
        %432 = vmatprep.subr.mxu0 0.0
        %433 = vmatpush1.msra.mxu0 %v410
        %434 = vmatprep.subr.mxu0 0.0
        %435 = vmatpush1.msra.mxu0 %v411
        %436 = vmatprep.subr.mxu0 0.0
        %437 = vmatpush1.msra.mxu0 %v428
        %438 = vmatprep.subr.mxu0 0.0
        %439 = vmatpush1.msra.mxu0 0.0
        %440 = vmatprep.subr.mxu0 0.0
        %441 = vmatpush1.msra.mxu0 0.0
        %442 = vmatprep.subr.mxu0 0.0
        %443 = vmatpush1.msra.mxu0 0.0
        %444 = vmatprep.subr.mxu0 0.0
        %445 = vmatpush1.msra.mxu0 0.0
        %446 = vmatprep.subr.mxu0 0.0
        %447 = vmatpush1.msra.mxu0 0.0
        %448 = vmatprep.subr.mxu0 0.0
        %449 = vmatpush1.msra.mxu0 0.0
        %450 = vmatprep.subr.mxu0 0.0
        %451 = vmatpush1.msra.mxu0 0.0
        %452 = vmatprep.subr.mxu0 0.0
        %453 = vmatpush1.msra.mxu0 0.0
        %454 = vmatprep.subr.mxu0 0.0
        %455 = vmatpush1.msra.mxu0 0.0
        %456 = vmatprep.subr.mxu0 0.0
        %457 = vmatpush1.msra.mxu0 0.0
        %458 = vmatprep.subr.mxu0 0.0
        %459 = vmatpush1.msra.mxu0 0.0
        %460 = vmatprep.subr.mxu0 0.0
        %461 = vmatpush1.msra.mxu0 0.0
        %462 = vmatprep.subr.mxu0 0.0
        %463 = vmatpush1.msra.mxu0 0.0
        %464 = vmatprep.subr.mxu0 0.0
        %465 = vmatpush1.msra.mxu0 0.0
        %466 = vmatprep.subr.mxu0 0.0
        %467 = vmatpush1.msra.mxu0 0.0
        %468 = vmatprep.subr.mxu0 0.0
        %469 = vmatpush1.msra.mxu0 0.0
        %470 = vmatprep.subr.mxu0 0.0
        %471 = vmatpush1.msra.mxu0 0.0
        %472 = vmatprep.subr.mxu0 0.0
        %473 = vmatpush1.msra.mxu0 0.0
        %474 = vmatprep.subr.mxu0 0.0
        %475 = vmatpush1.msra.mxu0 0.0
        %476 = vmatprep.subr.mxu0 0.0
        %477 = vmatpush1.msra.mxu0 0.0
        %478 = vmatprep.subr.mxu0 0.0
        %479 = vmatpush1.msra.mxu0 0.0
        %480 = vmatprep.subr.mxu0 0.0
        %481 = vmatpush1.msra.mxu0 0.0
        %482 = vmatprep.subr.mxu0 0.0
        %483 = vmatpush1.msra.mxu0 0.0
        %484 = vmatprep.subr.mxu0 0.0
        %485 = vmatpush1.msra.mxu0 0.0
        %486 = vmatprep.subr.mxu0 0.0
        %487 = vmatpush1.msra.mxu0 0.0
        %488 = vmatprep.subr.mxu0 0.0
        %489 = vmatpush1.msra.mxu0 0.0
        %490 = vmatprep.subr.mxu0 0.0
        %491 = vmatpush1.msra.mxu0 0.0
        %492 = vmatprep.subr.mxu0 0.0
        %493 = vmatpush1.msra.mxu0 0.0
        %494 = vmatprep.mubr.f32.mxu0 0.0
        %495 = vmatmul.mubr.f32.gmra.mrb[0].mxu0 %v415
        %v496 = vpop.f32.mrb[0].mxu0
        %v497 = vadd.f32 0.0, %v496
        %v498 = vpop.f32.mrb[0].mxu0
        %499 = vmatprep.mubr.f32.mxu0 0.0
        %500 = vmatmul.mubr.f32.gmra.mrb[0].mxu0 %v418
        %v501 = vpop.f32.mrb[0].mxu0
        %v502 = vadd.f32 0.0, %v501
        %v503 = vpop.f32.mrb[0].mxu0
        %504 = vmatprep.mubr.f32.mxu0 0.0
        %505 = vmatmul.mubr.f32.gmra.mrb[0].mxu0 %v421
        %v506 = vpop.f32.mrb[0].mxu0
        %v507 = vadd.f32 0.0, %v506
        %v508 = vpop.f32.mrb[0].mxu0
        %509 = vmatprep.mubr.f32.mxu0 0.0
        %510 = vmatmul.mubr.f32.gmra.mrb[0].mxu0 %v424
        %v511 = vpop.f32.mrb[0].mxu0
        %v512 = vadd.f32 0.0, %v511
        %v513 = vpop.f32.mrb[0].mxu0
        %514 = vdwg.mxu0
        %v515 = vld [vmem:[%s3] sm:$0x3]
        %v517 = vsel %vm413, %v515, 0
        %v520 = vsel %vm426, %v512, 0
        %522 = vmatprep.subr.mxu0 0.0
        %523 = vmatpush1.msra.mxu0 %v497
        %524 = vmatprep.subr.mxu0 0.0
        %525 = vmatpush1.msra.mxu0 %v502
        %526 = vmatprep.subr.mxu0 0.0
        %527 = vmatpush1.msra.mxu0 %v507
        %528 = vmatprep.subr.mxu0 0.0
        %529 = vmatpush1.msra.mxu0 %v520
        %530 = vmatprep.subr.mxu0 0.0
        %531 = vmatpush1.msra.mxu0 0.0
        %532 = vmatprep.subr.mxu0 0.0
        %533 = vmatpush1.msra.mxu0 0.0
        %534 = vmatprep.subr.mxu0 0.0
        %535 = vmatpush1.msra.mxu0 0.0
        %536 = vmatprep.subr.mxu0 0.0
        %537 = vmatpush1.msra.mxu0 0.0
        %538 = vmatprep.subr.mxu0 0.0
        %539 = vmatpush1.msra.mxu0 0.0
        %540 = vmatprep.subr.mxu0 0.0
        %541 = vmatpush1.msra.mxu0 0.0
        %542 = vmatprep.subr.mxu0 0.0
        %543 = vmatpush1.msra.mxu0 0.0
        %544 = vmatprep.subr.mxu0 0.0
        %545 = vmatpush1.msra.mxu0 0.0
        %546 = vmatprep.subr.mxu0 0.0
        %547 = vmatpush1.msra.mxu0 0.0
        %548 = vmatprep.subr.mxu0 0.0
        %549 = vmatpush1.msra.mxu0 0.0
        %550 = vmatprep.subr.mxu0 0.0
        %551 = vmatpush1.msra.mxu0 0.0
        %552 = vmatprep.subr.mxu0 0.0
        %553 = vmatpush1.msra.mxu0 0.0
        %554 = vmatprep.subr.mxu0 0.0
        %555 = vmatpush1.msra.mxu0 0.0
        %556 = vmatprep.subr.mxu0 0.0
        %557 = vmatpush1.msra.mxu0 0.0
        %558 = vmatprep.subr.mxu0 0.0
        %559 = vmatpush1.msra.mxu0 0.0
        %560 = vmatprep.subr.mxu0 0.0
        %561 = vmatpush1.msra.mxu0 0.0
        %562 = vmatprep.subr.mxu0 0.0
        %563 = vmatpush1.msra.mxu0 0.0
        %564 = vmatprep.subr.mxu0 0.0
        %565 = vmatpush1.msra.mxu0 0.0
        %566 = vmatprep.subr.mxu0 0.0
        %567 = vmatpush1.msra.mxu0 0.0
        %568 = vmatprep.subr.mxu0 0.0
        %569 = vmatpush1.msra.mxu0 0.0
        %570 = vmatprep.subr.mxu0 0.0
        %571 = vmatpush1.msra.mxu0 0.0
        %572 = vmatprep.subr.mxu0 0.0
        %573 = vmatpush1.msra.mxu0 0.0
        %574 = vmatprep.subr.mxu0 0.0
        %575 = vmatpush1.msra.mxu0 0.0
        %576 = vmatprep.subr.mxu0 0.0
        %577 = vmatpush1.msra.mxu0 0.0
        %578 = vmatprep.subr.mxu0 0.0
        %579 = vmatpush1.msra.mxu0 0.0
        %580 = vmatprep.subr.mxu0 0.0
        %581 = vmatpush1.msra.mxu0 0.0
        %582 = vmatprep.subr.mxu0 0.0
        %583 = vmatpush1.msra.mxu0 0.0
        %584 = vmatprep.subr.mxu0 0.0
        %585 = vmatpush1.msra.mxu0 0.0
        %586 = vmatprep.mubr.f32.mxu0 0.0
        %587 = vmatmul.mubr.f32.gmra.mrb[0].mxu0 %v517
        %v588 = vpop.f32.mrb[0].mxu0
        %v589 = vadd.f32 0.0, %v588
        %v590 = vpop.f32.mrb[0].mxu0
        %591 = vdwg.mxu0
        %v592 = vld [vmem:[%s369] sm:$0x3]
        %v593 = vld [vmem:[%s369 + $0x2] sm:$0x3]
        %vm594 = vnez %v592
        %vm595 = vnez %v593
        %v596 = vld [vmem:[%s6] sm:$0xff]
        %v597 = vld [vmem:[%s6 + $0x8] sm:$0xff]
        %v598 = vld [vmem:[%s6 + $0x10] sm:$0xff]
        %v599 = vld [vmem:[%s6 + $0x18] sm:$0xff]
        %v600 = vld [vmem:[%s6 + $0x20] sm:$0xff]
        %v601 = vld [vmem:[%s6 + $0x28] sm:$0xff]
        %v602 = vld [vmem:[%s6 + $0x30] sm:$0xff]
        %v603 = vld [vmem:[%s6 + $0x38] sm:$0xff]
        %v604 = vld [vmem:[%s6 + $0x40] sm:$0xff]
        %v605 = vld [vmem:[%s6 + $0x48] sm:$0xff]
        %v606 = vld [vmem:[%s6 + $0x50] sm:$0xff]
        %v607 = vld [vmem:[%s6 + $0x58] sm:$0xff]
        %v608 = vld [vmem:[%s6 + $0x60] sm:$0xff]
        %v609 = vld [vmem:[%s6 + $0x68] sm:$0xff]
        %v610 = vld [vmem:[%s6 + $0x70] sm:$0xff]
        %v611 = vld [vmem:[%s6 + $0x78] sm:$0xff]
        %v612 = vld [vmem:[%s4] sm:$0xff]
        %v613 = vld [vmem:[%s4 + $0x8] sm:$0xff]
        %v614 = vld [vmem:[%s4 + $0x10] sm:$0xff]
        %v615 = vld [vmem:[%s4 + $0x18] sm:$0xff]
        %v616 = vld [vmem:[%s4 + $0x20] sm:$0xff]
        %v617 = vld [vmem:[%s4 + $0x28] sm:$0xff]
        %v618 = vld [vmem:[%s4 + $0x30] sm:$0xff]
        %v619 = vld [vmem:[%s4 + $0x38] sm:$0xff]
        %v620 = vld [vmem:[%s4 + $0x40] sm:$0xff]
        %v621 = vld [vmem:[%s4 + $0x48] sm:$0xff]
        %v622 = vld [vmem:[%s4 + $0x50] sm:$0xff]
        %v623 = vld [vmem:[%s4 + $0x58] sm:$0xff]
        %v624 = vld [vmem:[%s4 + $0x60] sm:$0xff]
        %v625 = vld [vmem:[%s4 + $0x68] sm:$0xff]
        %v626 = vld [vmem:[%s4 + $0x70] sm:$0xff]
        %v627 = vld [vmem:[%s4 + $0x78] sm:$0xff]
        %v628 = vld [vmem:[%s5] sm:$0xff]
        %v629 = vld [vmem:[%s5 + $0x8] sm:$0xff]
        %v630 = vlaneseq
        %v631 = vshrl.u32 %v630, 7
        %v632 = vsub.s32 0, %v631
        %v633 = vrot.slane %v589, %v632
        %v634 = vmul.f32 %v628, %v633
        %v635 = vmul.f32 %v629, %v633
        %v636 = vlaneseq
        %v637 = vshrl.u32 %v636, 7
        %v638 = vsub.s32 1, %v637
        %v639 = vrot.slane %v589, %v638
        %640 = vmatprep.subr.mxu0 0.0
        %641 = vmatpush1.msra.mxu0 %v596
        %642 = vmatprep.subr.mxu0 0.0
        %643 = vmatpush1.msra.mxu0 %v597
        %644 = vmatprep.subr.mxu0 0.0
        %645 = vmatpush1.msra.mxu0 %v598
        %646 = vmatprep.subr.mxu0 0.0
        %647 = vmatpush1.msra.mxu0 %v599
        %648 = vmatprep.subr.mxu0 0.0
        %649 = vmatpush1.msra.mxu0 %v600
        %650 = vmatprep.subr.mxu0 0.0
        %651 = vmatpush1.msra.mxu0 %v601
        %652 = vmatprep.subr.mxu0 0.0
        %653 = vmatpush1.msra.mxu0 %v602
        %654 = vmatprep.subr.mxu0 0.0
        %655 = vmatpush1.msra.mxu0 %v603
        %656 = vmatprep.subr.mxu0 0.0
        %657 = vmatpush1.msra.mxu0 %v604
        %658 = vmatprep.subr.mxu0 0.0
        %659 = vmatpush1.msra.mxu0 %v605
        %660 = vmatprep.subr.mxu0 0.0
        %661 = vmatpush1.msra.mxu0 %v606
        %662 = vmatprep.subr.mxu0 0.0
        %663 = vmatpush1.msra.mxu0 %v607
        %664 = vmatprep.subr.mxu0 0.0
        %665 = vmatpush1.msra.mxu0 %v608
        %666 = vmatprep.subr.mxu0 0.0
        %667 = vmatpush1.msra.mxu0 %v609
        %668 = vmatprep.subr.mxu0 0.0
        %669 = vmatpush1.msra.mxu0 %v610
        %670 = vmatprep.subr.mxu0 0.0
        %671 = vmatpush1.msra.mxu0 %v611
        %672 = vmatprep.subr.mxu0 0.0
        %673 = vmatpush1.msra.mxu0 0.0
        %674 = vmatprep.subr.mxu0 0.0
        %675 = vmatpush1.msra.mxu0 0.0
        %676 = vmatprep.subr.mxu0 0.0
        %677 = vmatpush1.msra.mxu0 0.0
        %678 = vmatprep.subr.mxu0 0.0
        %679 = vmatpush1.msra.mxu0 0.0
        %680 = vmatprep.subr.mxu0 0.0
        %681 = vmatpush1.msra.mxu0 0.0
        %682 = vmatprep.subr.mxu0 0.0
        %683 = vmatpush1.msra.mxu0 0.0
        %684 = vmatprep.subr.mxu0 0.0
        %685 = vmatpush1.msra.mxu0 0.0
        %686 = vmatprep.subr.mxu0 0.0
        %687 = vmatpush1.msra.mxu0 0.0
        %688 = vmatprep.subr.mxu0 0.0
        %689 = vmatpush1.msra.mxu0 0.0
        %690 = vmatprep.subr.mxu0 0.0
        %691 = vmatpush1.msra.mxu0 0.0
        %692 = vmatprep.subr.mxu0 0.0
        %693 = vmatpush1.msra.mxu0 0.0
        %694 = vmatprep.subr.mxu0 0.0
        %695 = vmatpush1.msra.mxu0 0.0
        %696 = vmatprep.subr.mxu0 0.0
        %697 = vmatpush1.msra.mxu0 0.0
        %698 = vmatprep.subr.mxu0 0.0
        %699 = vmatpush1.msra.mxu0 0.0
        %700 = vmatprep.subr.mxu0 0.0
        %701 = vmatpush1.msra.mxu0 0.0
        %702 = vmatprep.subr.mxu0 0.0
        %703 = vmatpush1.msra.mxu0 0.0
        %704 = vmatprep.mubr.f32.mxu0 0.0
        %705 = vmatmul.mubr.f32.gmra.mrb[0].mxu0 %v634
        %v706 = vpop.f32.mrb[0].mxu0
        %v707 = vadd.f32 %v639, %v706
        %v708 = vpop.f32.mrb[0].mxu0
        %709 = vmatprep.mubr.f32.mxu0 0.0
        %710 = vmatmul.mubr.f32.gmra.mrb[0].mxu0 %v635
        %v711 = vpop.f32.mrb[0].mxu0
        %v712 = vadd.f32 %v639, %v711
        %v713 = vpop.f32.mrb[0].mxu0
        %714 = vdwg.mxu0
        %v715 = vmul.f32 %v707, 0.2
        %v716 = vmul.f32 %v712, 0.2
        %v717 = vmax.f32 %v707, %v715
        %v718 = vmax.f32 %v712, %v716
        %v719 = vsel %vm594, 16843009, 0
        %v720 = vsel %vm595, 16843009, 0
        %v721 = vunpack.c.0.s8 %v719
        %v722 = vunpack.c.0.s8 %v720
        %vm723 = vcmp.ne.s32.totalorder %v721, 0
        %vm724 = vcmp.ne.s32.totalorder %v722, 0
        %v725 = vsel %vm723, %v717, -1e+30
        %v726 = vsel %vm724, %v718, -1e+30
        %v727 = vmax.f32 %v725, %v726
        %v728 = vrot.slane %v727, 4
        %v729 = vmax.f32 %v727, %v728
        %v730 = vrot.slane %v729, 2
        %v731 = vmax.f32 %v729, %v730
        %v732 = vrot.slane %v731, 1
        %v733 = vmax.f32 %v731, %v732
        %v734 = vsub.f32 %v725, %v733
        %v735 = vsub.f32 %v726, %v733
        %v736 = vmul.f32 %v734, 1.442695
        %v737 = vpow.pop %v736
        %v738 = vmul.f32 %v735, 1.442695
        %v739 = vpow.pop %v738
        %v740 = vadd.f32 %v737, %v739
        %v741 = vrot.slane %v740, 4
        %v742 = vadd.f32 %v740, %v741
        %v743 = vrot.slane %v742, 2
        %v744 = vadd.f32 %v742, %v743
        %v745 = vrot.slane %v744, 1
        %v746 = vadd.f32 %v744, %v745
        %v747 = vrcp.pop %v746
        %v748 = vmul.f32 %v737, %v747
        %v749 = vmul.f32 %v739, %v747
        %vm750 = vcmask 130048
        %v752 = vsel %vm750, %v612, 0
        %v755 = vsel %vm750, %v613, 0
        %v758 = vsel %vm750, %v614, 0
        %v761 = vsel %vm750, %v615, 0
        %v764 = vsel %vm750, %v616, 0
        %v767 = vsel %vm750, %v617, 0
        %v770 = vsel %vm750, %v618, 0
        %v773 = vsel %vm750, %v619, 0
        %v776 = vsel %vm750, %v620, 0
        %v779 = vsel %vm750, %v621, 0
        %v782 = vsel %vm750, %v622, 0
        %v785 = vsel %vm750, %v623, 0
        %v788 = vsel %vm750, %v624, 0
        %v791 = vsel %vm750, %v625, 0
        %v794 = vsel %vm750, %v626, 0
        %v797 = vsel %vm750, %v627, 0
        %799 = vmatprep.subr.mxu0 0.0
        %800 = vmatpush1.msra.mxu0 %v748
        %801 = vmatprep.subr.mxu0 0.0
        %802 = vmatpush1.msra.mxu0 %v749
        %803 = vmatprep.subr.mxu0 0.0
        %804 = vmatpush1.msra.mxu0 0.0
        %805 = vmatprep.subr.mxu0 0.0
        %806 = vmatpush1.msra.mxu0 0.0
        %807 = vmatprep.subr.mxu0 0.0
        %808 = vmatpush1.msra.mxu0 0.0
        %809 = vmatprep.subr.mxu0 0.0
        %810 = vmatpush1.msra.mxu0 0.0
        %811 = vmatprep.subr.mxu0 0.0
        %812 = vmatpush1.msra.mxu0 0.0
        %813 = vmatprep.subr.mxu0 0.0
        %814 = vmatpush1.msra.mxu0 0.0
        %815 = vmatprep.subr.mxu0 0.0
        %816 = vmatpush1.msra.mxu0 0.0
        %817 = vmatprep.subr.mxu0 0.0
        %818 = vmatpush1.msra.mxu0 0.0
        %819 = vmatprep.subr.mxu0 0.0
        %820 = vmatpush1.msra.mxu0 0.0
        %821 = vmatprep.subr.mxu0 0.0
        %822 = vmatpush1.msra.mxu0 0.0
        %823 = vmatprep.subr.mxu0 0.0
        %824 = vmatpush1.msra.mxu0 0.0
        %825 = vmatprep.subr.mxu0 0.0
        %826 = vmatpush1.msra.mxu0 0.0
        %827 = vmatprep.subr.mxu0 0.0
        %828 = vmatpush1.msra.mxu0 0.0
        %829 = vmatprep.subr.mxu0 0.0
        %830 = vmatpush1.msra.mxu0 0.0
        %831 = vmatprep.subr.mxu0 0.0
        %832 = vmatpush1.msra.mxu0 0.0
        %833 = vmatprep.subr.mxu0 0.0
        %834 = vmatpush1.msra.mxu0 0.0
        %835 = vmatprep.subr.mxu0 0.0
        %836 = vmatpush1.msra.mxu0 0.0
        %837 = vmatprep.subr.mxu0 0.0
        %838 = vmatpush1.msra.mxu0 0.0
        %839 = vmatprep.subr.mxu0 0.0
        %840 = vmatpush1.msra.mxu0 0.0
        %841 = vmatprep.subr.mxu0 0.0
        %842 = vmatpush1.msra.mxu0 0.0
        %843 = vmatprep.subr.mxu0 0.0
        %844 = vmatpush1.msra.mxu0 0.0
        %845 = vmatprep.subr.mxu0 0.0
        %846 = vmatpush1.msra.mxu0 0.0
        %847 = vmatprep.subr.mxu0 0.0
        %848 = vmatpush1.msra.mxu0 0.0
        %849 = vmatprep.subr.mxu0 0.0
        %850 = vmatpush1.msra.mxu0 0.0
        %851 = vmatprep.subr.mxu0 0.0
        %852 = vmatpush1.msra.mxu0 0.0
        %853 = vmatprep.subr.mxu0 0.0
        %854 = vmatpush1.msra.mxu0 0.0
        %855 = vmatprep.subr.mxu0 0.0
        %856 = vmatpush1.msra.mxu0 0.0
        %857 = vmatprep.subr.mxu0 0.0
        %858 = vmatpush1.msra.mxu0 0.0
        %859 = vmatprep.subr.mxu0 0.0
        %860 = vmatpush1.msra.mxu0 0.0
        %861 = vmatprep.subr.mxu0 0.0
        %862 = vmatpush1.msra.mxu0 0.0
        %863 = vmatprep.mubr.f32.mxu0 0.0
        %864 = vmatmul.mubr.f32.gmra.mrb[0].mxu0 %v752
        %v865 = vpop.f32.mrb[0].mxu0
        %v866 = vadd.f32 0.0, %v865
        %v867 = vpop.f32.mrb[0].mxu0
        %868 = vmatprep.mubr.f32.mxu0 0.0
        %869 = vmatmul.mubr.f32.gmra.mrb[0].mxu0 %v755
        %v870 = vpop.f32.mrb[0].mxu0
        %v871 = vadd.f32 0.0, %v870
        %v872 = vpop.f32.mrb[0].mxu0
        %873 = vmatprep.mubr.f32.mxu0 0.0
        %874 = vmatmul.mubr.f32.gmra.mrb[0].mxu0 %v758
        %v875 = vpop.f32.mrb[0].mxu0
        %v876 = vadd.f32 0.0, %v875
        %v877 = vpop.f32.mrb[0].mxu0
        %878 = vmatprep.mubr.f32.mxu0 0.0
        %879 = vmatmul.mubr.f32.gmra.mrb[0].mxu0 %v761
        %v880 = vpop.f32.mrb[0].mxu0
        %v881 = vadd.f32 0.0, %v880
        %v882 = vpop.f32.mrb[0].mxu0
        %883 = vmatprep.mubr.f32.mxu0 0.0
        %884 = vmatmul.mubr.f32.gmra.mrb[0].mxu0 %v764
        %v885 = vpop.f32.mrb[0].mxu0
        %v886 = vadd.f32 0.0, %v885
        %v887 = vpop.f32.mrb[0].mxu0
        %888 = vmatprep.mubr.f32.mxu0 0.0
        %889 = vmatmul.mubr.f32.gmra.mrb[0].mxu0 %v767
        %v890 = vpop.f32.mrb[0].mxu0
        %v891 = vadd.f32 0.0, %v890
        %v892 = vpop.f32.mrb[0].mxu0
        %893 = vmatprep.mubr.f32.mxu0 0.0
        %894 = vmatmul.mubr.f32.gmra.mrb[0].mxu0 %v770
        %v895 = vpop.f32.mrb[0].mxu0
        %v896 = vadd.f32 0.0, %v895
        %v897 = vpop.f32.mrb[0].mxu0
        %898 = vmatprep.mubr.f32.mxu0 0.0
        %899 = vmatmul.mubr.f32.gmra.mrb[0].mxu0 %v773
        %v900 = vpop.f32.mrb[0].mxu0
        %v901 = vadd.f32 0.0, %v900
        %v902 = vpop.f32.mrb[0].mxu0
        %903 = vmatprep.mubr.f32.mxu0 0.0
        %904 = vmatmul.mubr.f32.gmra.mrb[0].mxu0 %v776
        %v905 = vpop.f32.mrb[0].mxu0
        %v906 = vadd.f32 0.0, %v905
        %v907 = vpop.f32.mrb[0].mxu0
        %908 = vmatprep.mubr.f32.mxu0 0.0
        %909 = vmatmul.mubr.f32.gmra.mrb[0].mxu0 %v779
        %v910 = vpop.f32.mrb[0].mxu0
        %v911 = vadd.f32 0.0, %v910
        %v912 = vpop.f32.mrb[0].mxu0
        %913 = vmatprep.mubr.f32.mxu0 0.0
        %914 = vmatmul.mubr.f32.gmra.mrb[0].mxu0 %v782
        %v915 = vpop.f32.mrb[0].mxu0
        %v916 = vadd.f32 0.0, %v915
        %v917 = vpop.f32.mrb[0].mxu0
        %918 = vmatprep.mubr.f32.mxu0 0.0
        %919 = vmatmul.mubr.f32.gmra.mrb[0].mxu0 %v785
        %v920 = vpop.f32.mrb[0].mxu0
        %v921 = vadd.f32 0.0, %v920
        %v922 = vpop.f32.mrb[0].mxu0
        %923 = vmatprep.mubr.f32.mxu0 0.0
        %924 = vmatmul.mubr.f32.gmra.mrb[0].mxu0 %v788
        %v925 = vpop.f32.mrb[0].mxu0
        %v926 = vadd.f32 0.0, %v925
        %v927 = vpop.f32.mrb[0].mxu0
        %928 = vmatprep.mubr.f32.mxu0 0.0
        %929 = vmatmul.mubr.f32.gmra.mrb[0].mxu0 %v791
        %v930 = vpop.f32.mrb[0].mxu0
        %v931 = vadd.f32 0.0, %v930
        %v932 = vpop.f32.mrb[0].mxu0
        %933 = vmatprep.mubr.f32.mxu0 0.0
        %934 = vmatmul.mubr.f32.gmra.mrb[0].mxu0 %v794
        %v935 = vpop.f32.mrb[0].mxu0
        %v936 = vadd.f32 0.0, %v935
        %v937 = vpop.f32.mrb[0].mxu0
        %938 = vmatprep.mubr.f32.mxu0 0.0
        %939 = vmatmul.mubr.f32.gmra.mrb[0].mxu0 %v797
        %v940 = vpop.f32.mrb[0].mxu0
        %v941 = vadd.f32 0.0, %v940
        %v942 = vpop.f32.mrb[0].mxu0
        %943 = vdwg.mxu0
        %v944 = vmul.f32 %v866, %v596
        %v945 = vmul.f32 %v871, %v597
        %v946 = vmul.f32 %v876, %v598
        %v947 = vmul.f32 %v881, %v599
        %v948 = vmul.f32 %v886, %v600
        %v949 = vmul.f32 %v891, %v601
        %v950 = vmul.f32 %v896, %v602
        %v951 = vmul.f32 %v901, %v603
        %v952 = vmul.f32 %v906, %v604
        %v953 = vmul.f32 %v911, %v605
        %v954 = vmul.f32 %v916, %v606
        %v955 = vmul.f32 %v921, %v607
        %v956 = vmul.f32 %v926, %v608
        %v957 = vmul.f32 %v931, %v609
        %v958 = vmul.f32 %v936, %v610
        %v959 = vmul.f32 %v941, %v611
        %v960 = vld [vmem:[%s7] sm:$0xff]
        %v961 = vld [vmem:[%s7 + $0x8] sm:$0xff]
        %v962 = vld [vmem:[%s7 + $0x10] sm:$0xff]
        %v963 = vld [vmem:[%s7 + $0x18] sm:$0x3f]
        %965 = vset.pattern.permute.xlu0 0
        %966 = vperm.xlu0 %965, %v960
        %v967 = vpop.permute.xlu0 %966
        %970 = vset.pattern.permute.xlu0 0
        %971 = vperm.xlu0 %970, %v961
        %v972 = vpop.permute.xlu0 %971
        %975 = vset.pattern.permute.xlu0 0
        %976 = vperm.xlu0 %975, %v962
        %v977 = vpop.permute.xlu0 %976
        %980 = vset.pattern.permute.xlu0 0
        %981 = vperm.xlu0 %980, %v963
        %v982 = vpop.permute.xlu0 %981
        %984 = vmatprep.subr.mxu0 0.0
        %985 = vmatpush1.msra.mxu0 %v944
        %986 = vmatprep.subr.mxu0 0.0
        %987 = vmatpush1.msra.mxu0 %v945
        %988 = vmatprep.subr.mxu0 0.0
        %989 = vmatpush1.msra.mxu0 %v946
        %990 = vmatprep.subr.mxu0 0.0
        %991 = vmatpush1.msra.mxu0 %v947
        %992 = vmatprep.subr.mxu0 0.0
        %993 = vmatpush1.msra.mxu0 %v948
        %994 = vmatprep.subr.mxu0 0.0
        %995 = vmatpush1.msra.mxu0 %v949
        %996 = vmatprep.subr.mxu0 0.0
        %997 = vmatpush1.msra.mxu0 %v950
        %998 = vmatprep.subr.mxu0 0.0
        %999 = vmatpush1.msra.mxu0 %v951
        %1000 = vmatprep.subr.mxu0 0.0
        %1001 = vmatpush1.msra.mxu0 %v952
        %1002 = vmatprep.subr.mxu0 0.0
        %1003 = vmatpush1.msra.mxu0 %v953
        %1004 = vmatprep.subr.mxu0 0.0
        %1005 = vmatpush1.msra.mxu0 %v954
        %1006 = vmatprep.subr.mxu0 0.0
        %1007 = vmatpush1.msra.mxu0 %v955
        %1008 = vmatprep.subr.mxu0 0.0
        %1009 = vmatpush1.msra.mxu0 %v956
        %1010 = vmatprep.subr.mxu0 0.0
        %1011 = vmatpush1.msra.mxu0 %v957
        %1012 = vmatprep.subr.mxu0 0.0
        %1013 = vmatpush1.msra.mxu0 %v958
        %1014 = vmatprep.subr.mxu0 0.0
        %1015 = vmatpush1.msra.mxu0 %v959
        %1016 = vmatprep.subr.mxu0 0.0
        %1017 = vmatpush1.msra.mxu0 0.0
        %1018 = vmatprep.subr.mxu0 0.0
        %1019 = vmatpush1.msra.mxu0 0.0
        %1020 = vmatprep.subr.mxu0 0.0
        %1021 = vmatpush1.msra.mxu0 0.0
        %1022 = vmatprep.subr.mxu0 0.0
        %1023 = vmatpush1.msra.mxu0 0.0
        %1024 = vmatprep.subr.mxu0 0.0
        %1025 = vmatpush1.msra.mxu0 0.0
        %1026 = vmatprep.subr.mxu0 0.0
        %1027 = vmatpush1.msra.mxu0 0.0
        %1028 = vmatprep.subr.mxu0 0.0
        %1029 = vmatpush1.msra.mxu0 0.0
        %1030 = vmatprep.subr.mxu0 0.0
        %1031 = vmatpush1.msra.mxu0 0.0
        %1032 = vmatprep.subr.mxu0 0.0
        %1033 = vmatpush1.msra.mxu0 0.0
        %1034 = vmatprep.subr.mxu0 0.0
        %1035 = vmatpush1.msra.mxu0 0.0
        %1036 = vmatprep.subr.mxu0 0.0
        %1037 = vmatpush1.msra.mxu0 0.0
        %1038 = vmatprep.subr.mxu0 0.0
        %1039 = vmatpush1.msra.mxu0 0.0
        %1040 = vmatprep.subr.mxu0 0.0
        %1041 = vmatpush1.msra.mxu0 0.0
        %1042 = vmatprep.subr.mxu0 0.0
        %1043 = vmatpush1.msra.mxu0 0.0
        %1044 = vmatprep.subr.mxu0 0.0
        %1045 = vmatpush1.msra.mxu0 0.0
        %1046 = vmatprep.subr.mxu0 0.0
        %1047 = vmatpush1.msra.mxu0 0.0
        %1048 = vmatprep.mubr.f32.mxu0 0.0
        %1049 = vmatmul.mubr.f32.gmra.mrb[0].mxu0 %v497
        %v1050 = vpop.f32.mrb[0].mxu0
        %v1051 = vadd.f32 %v967, %v1050
        %v1052 = vpop.f32.mrb[0].mxu0
        %1053 = vmatprep.mubr.f32.mxu0 0.0
        %1054 = vmatmul.mubr.f32.gmra.mrb[0].mxu0 %v502
        %v1055 = vpop.f32.mrb[0].mxu0
        %v1056 = vadd.f32 %v972, %v1055
        %v1057 = vpop.f32.mrb[0].mxu0
        %1058 = vmatprep.mubr.f32.mxu0 0.0
        %1059 = vmatmul.mubr.f32.gmra.mrb[0].mxu0 %v507
        %v1060 = vpop.f32.mrb[0].mxu0
        %v1061 = vadd.f32 %v977, %v1060
        %v1062 = vpop.f32.mrb[0].mxu0
        %1063 = vmatprep.mubr.f32.mxu0 0.0
        %1064 = vmatmul.mubr.f32.gmra.mrb[0].mxu0 %v512
        %v1065 = vpop.f32.mrb[0].mxu0
        %v1066 = vadd.f32 %v982, %v1065
        %v1067 = vpop.f32.mrb[0].mxu0
        %1068 = vdwg.mxu0
        %1069 = vst [vmem:[%s402] sm:$0xff] %v1051
        %1070 = vst [vmem:[%s402 + $0x8] sm:$0xff] %v1056
        %1071 = vst [vmem:[%s402 + $0x10] sm:$0xff] %v1061
        %1072 = vst [vmem:[%s402 + $0x18] sm:$0x3f] %v1066
        %s1073 = sand.u32 %s205, 1
        %s1074 = sand.u32 %s205, 1
        %s1075 = smul.addr %s1074, 32
        %s1076 = scalar_lea.vmem [#allocation4], %s1075
        // Predicated region
        $region125: #{gat_layer_forward.1} parent=115 // pred_check
          %p1077 = pneg %p215
        $region126: #{gat_layer_forward.1} parent=115 // pred_check_branch
          %1079 = sbr.rel (%p1077) target = $region128
        $region127: #{gat_layer_forward.1} parent=115 // pred_region
          %s1080 = smul.addr %s19, 8
          %s1081 = scalar_lea.vmem %s8, %s1080
          // Predicated region
          $region129: #{gat_layer_forward.1} parent=127 // pred_check
            _
          $region130: #{gat_layer_forward.1} parent=127 // pred_check_branch
            %1083 = sbr.rel (0) target = $region132
          $region131: #{gat_layer_forward.1} parent=127 // pred_region
            // Predicated region
            $region133: #{gat_layer_forward.1} parent=131 // pred_check
              _
            $region134: #{gat_layer_forward.1} parent=131 // pred_check_branch
              %1085 = sbr.rel (0) target = $region136
            $region135: #{gat_layer_forward.1} parent=131 // pred_region
              // Predicated region
              $region148: #{gat_layer_forward.1} parent=135 // pred_check
                _
              $region149: #{gat_layer_forward.1} parent=135 // pred_check_branch
                %1106 = sbr.rel (0) target = $region151
              $region150: #{gat_layer_forward.1} parent=135 // pred_region
                loop: start=0, step=1, limit=1
                $region152: #{gat_layer_forward.1} parent=150 // loop_pre_header
                  _
                $region153: #{gat_layer_forward.1} parent=150 // loop_header
                  %s1108 = sphi 0, %s1112
                  %p1109 = scmp.ge.s32.totalorder %s1108, 1
                  %s1113 = sphi %s1076, %s1076
                  %s1114 = sphi %s1081, %s1081
                $region154: #{gat_layer_forward.1} parent=150 // loop_header_branch
                  %1111 = sbr.rel (%p1109) target = $region158
                $region155: #{gat_layer_forward.1} parent=150 // loop_body
                  %v1115 = vld [vmem:[%s1113] sm:$0xff]
                  %1116 = vst [vmem:[%s1114] sm:$0xff] %v1115
                  %v1117 = vld [vmem:[%s1113 + $0x8] sm:$0xff]
                  %1118 = vst [vmem:[%s1114 + $0x20] sm:$0xff] %v1117
                  %v1119 = vld [vmem:[%s1113 + $0x10] sm:$0xff]
                  %1120 = vst [vmem:[%s1114 + $0x40] sm:$0xff] %v1119
                  %v1121 = vld [vmem:[%s1113 + $0x18] sm:$0xff]
                  %1122 = vst [vmem:[%s1114 + $0x60] sm:$0xff] %v1121
                $region156: #{gat_layer_forward.1} parent=150 // loop_footer
                  %s1112 = sadd.s32 1, %s1108
                $region157: #{gat_layer_forward.1} parent=150 // loop_footer_branch
                  %1107 = sbr.rel target = $region153
                $region158: #{gat_layer_forward.1} parent=150 // loop_exit
                  _
              $region151: #{gat_layer_forward.1} parent=135 // pred_fallthru
                _
              // Predicated region
              $region159: #{gat_layer_forward.1} parent=135 // pred_check
                _
              $region160: #{gat_layer_forward.1} parent=135 // pred_check_branch
                %1124 = sbr.rel target = $region162
              $region161: #{gat_layer_forward.1} parent=135 // pred_region
                _
              $region162: #{gat_layer_forward.1} parent=135 // pred_fallthru
                _
            $region136: #{gat_layer_forward.1} parent=131 // pred_fallthru
              _
            // Predicated region
            $region137: #{gat_layer_forward.1} parent=131 // pred_check
              _
            $region138: #{gat_layer_forward.1} parent=131 // pred_check_branch
              %1087 = sbr.rel target = $region140
            $region139: #{gat_layer_forward.1} parent=131 // pred_region
              loop: start=0, step=1, limit=1
              $region141: #{gat_layer_forward.1} parent=139 // loop_pre_header
                _
              $region142: #{gat_layer_forward.1} parent=139 // loop_header
                %s1090 = sphi 0, %s1094
                %p1091 = scmp.ge.s32.totalorder %s1090, 1
                %s1095 = sphi %s1076, %s1076
                %s1096 = sphi %s1081, %s1081
              $region143: #{gat_layer_forward.1} parent=139 // loop_header_branch
                %1093 = sbr.rel (%p1091) target = $region147
              $region144: #{gat_layer_forward.1} parent=139 // loop_body
                %v1097 = vld [vmem:[%s1095] sm:$0xff]
                %1098 = vst [vmem:[%s1096] sm:$0xff] %v1097
                %v1099 = vld [vmem:[%s1095 + $0x8] sm:$0xff]
                %1100 = vst [vmem:[%s1096 + $0x20] sm:$0xff] %v1099
                %v1101 = vld [vmem:[%s1095 + $0x10] sm:$0xff]
                %1102 = vst [vmem:[%s1096 + $0x40] sm:$0xff] %v1101
                %v1103 = vld [vmem:[%s1095 + $0x18] sm:$0xff]
                %1104 = vst [vmem:[%s1096 + $0x60] sm:$0xff] %v1103
              $region145: #{gat_layer_forward.1} parent=139 // loop_footer
                %s1094 = sadd.s32 1, %s1090
              $region146: #{gat_layer_forward.1} parent=139 // loop_footer_branch
                %1089 = sbr.rel target = $region142
              $region147: #{gat_layer_forward.1} parent=139 // loop_exit
                _
            $region140: #{gat_layer_forward.1} parent=131 // pred_fallthru
              _
          $region132: #{gat_layer_forward.1} parent=127 // pred_fallthru
            _
          %1125 = vnop
        $region128: #{gat_layer_forward.1} parent=115 // pred_fallthru
          _
      $region116: #{gat_layer_forward.1} parent=5 // pred_fallthru
        _
      %p1126 = scmp.le.s32.totalorder 2, %s14
      // Predicated region
      $region163: #{gat_layer_forward.1} parent=5 // pred_check
        %p1127 = pneg %p1126
      $region164: #{gat_layer_forward.1} parent=5 // pred_check_branch
        %1129 = sbr.rel (%p1127) target = $region166
      $region165: #{gat_layer_forward.1} parent=5 // pred_region
        %s1130 = ssub.s32 %s14, 2
        // Predicated region
        $region167: #{gat_layer_forward.1} parent=165 // pred_check
          %p1131 = pneg %p221
        $region168: #{gat_layer_forward.1} parent=165 // pred_check_branch
          %1133 = sbr.rel (%p1131) target = $region170
        $region169: #{gat_layer_forward.1} parent=165 // pred_region
          %s1134 = sand.u32 %s206, 1
          %s1135 = sand.u32 %s206, 1
          %s1136 = smul.addr %s1135, 32
          %s1137 = scalar_lea.vmem [#allocation4], %s1136
        $region170: #{gat_layer_forward.1} parent=165 // pred_fallthru
          _
      $region166: #{gat_layer_forward.1} parent=5 // pred_fallthru
        _
    $region6: #{gat_layer_forward.1} parent=1 // loop_footer
      %s18 = sadd.s32 1, %s14
    $region7: #{gat_layer_forward.1} parent=1 // loop_footer_branch
      %13 = sbr.rel target = $region3
    $region8: #{gat_layer_forward.1} parent=1 // loop_exit
      _

</llo_original>
